<compile_context>
chip_gen: v7x
topology: tpu7x:2x2x1
jax: 0.10.0
libtpu: 0.0.40
codegen_flags: <defaults>
</compile_context>

<pallas_src>
import functools

import jax
import jax.numpy as jnp
from jax.experimental import pallas as pl
from jax.experimental.pallas import tpu as pltpu


# ----------------------------------------------------------------------------
# Small helpers: VMEM budget and tile selection
# ----------------------------------------------------------------------------
def _round_up(x, m):
    return ((x + m - 1) // m) * m


def _lane_pad(n):
    return max(_round_up(n, 128), 128)


@functools.lru_cache(maxsize=None)
def _vmem_limit_bytes():
    """Per-generation VMEM limit with ~20% headroom (compiler internal scratch
    and double-buffer overshoot).  Falls back to a v7x-safe 64 MiB capacity."""
    cap = 64 * 1024 * 1024
    try:
        info = pltpu.get_tpu_info()
        c = int(getattr(info, "vmem_capacity_bytes", 0) or 0)
        if c > 0:
            cap = c
    except Exception:
        pass
    return int(cap * 0.8)


def _choose_tile(dim, target, align):
    """Return (tile, padded_dim).  tile == dim when dim <= target (full blocks
    are always layout-legal); otherwise an `align`-multiple <= target, padding
    the dim up to a tile multiple when no exact divisor exists."""
    if dim <= target:
        return dim, dim
    top = max((target // align) * align, align)
    t = top
    while t >= align:
        if dim % t == 0:
            return t, dim
        t -= align
    return top, _round_up(dim, top)


def _choose_kv_tile(lk, target):
    """KV-length tile: cannot be zero-padded (it would corrupt the softmax
    denominator), so pick an exact divisor (128-multiples preferred, then
    8-multiples) or fall back to one full-length block."""
    if lk <= target:
        return lk
    for align in (128, 8):
        t = (target // align) * align
        while t >= align:
            if lk % t == 0:
                return t
            t -= align
    # TODO(synk): non-8-divisible KV lengths take a single full-length block;
    # proper masked edge tiles would be needed to bound VMEM here.
    return lk


# ----------------------------------------------------------------------------
# Kernel 1: tiled, pipelined bias-free Linear  (o = x @ W.T, nn.Linear layout)
# ----------------------------------------------------------------------------
def _linear_kernel(x_ref, w_ref, o_ref, acc_ref, *, compute_dtype):
    @pl.when(pl.program_id(2) == 0)
    def _init():
        acc_ref[...] = jnp.zeros_like(acc_ref)

    acc_ref[...] += jax.lax.dot_general(
        x_ref[...].astype(compute_dtype),
        w_ref[...].astype(compute_dtype),
        dimension_numbers=(((1,), (1,)), ((), ())),     # contract K; no .T
        preferred_element_type=jnp.float32,
    )

    @pl.when(pl.program_id(2) == pl.num_programs(2) - 1)
    def _finalize():
        o_ref[...] = acc_ref[...].astype(o_ref.dtype)


def linear_nobias(x2d, w, *, compute_dtype=jnp.bfloat16, out_dtype=None):
    """x2d: (M, K), w: (N, K) -> (M, N).  bf16 MXU operands, f32 accumulation."""
    M, K = x2d.shape
    N = w.shape[0]
    out_dtype = x2d.dtype if out_dtype is None else out_dtype

    tm, Mp = _choose_tile(M, 256, 8)
    tn, Np = _choose_tile(N, 256, 128)
    tk, Kp = _choose_tile(K, 512, 128)
    if (Mp, Kp) != (M, K):
        x2d = jnp.pad(x2d, ((0, Mp - M), (0, Kp - K)))   # zero pad: exact math
    if (Np, Kp) != (N, K):
        w = jnp.pad(w, ((0, Np - N), (0, Kp - K)))

    cost = pl.CostEstimate(
        flops=int(2 * M * K * N),
        transcendentals=0,
        bytes_accessed=int(x2d.dtype.itemsize * M * K + w.dtype.itemsize * N * K
                           + jnp.dtype(out_dtype).itemsize * M * N),
    )
    out = pl.pallas_call(
        functools.partial(_linear_kernel, compute_dtype=compute_dtype),
        out_shape=jax.ShapeDtypeStruct((Mp, Np), out_dtype),
        grid_spec=pltpu.PrefetchScalarGridSpec(
            num_scalar_prefetch=0,
            grid=(Mp // tm, Np // tn, Kp // tk),
            in_specs=[
                pl.BlockSpec((tm, tk), lambda i, j, kk: (i, kk)),
                pl.BlockSpec((tn, tk), lambda i, j, kk: (j, kk)),
            ],
            out_specs=pl.BlockSpec((tm, tn), lambda i, j, kk: (i, j)),
            scratch_shapes=[pltpu.VMEM((tm, tn), jnp.float32)],
        ),
        compiler_params=pltpu.CompilerParams(
            dimension_semantics=("parallel", "parallel", "arbitrary"),
            vmem_limit_bytes=_vmem_limit_bytes(),
        ),
        cost_estimate=cost,
    )(x2d, w)
    if (Mp, Np) != (M, N):
        out = out[:M, :N]
    return out


# ----------------------------------------------------------------------------
# Kernel 2: flash-style scaled dot-product attention, head-major layout
#   q/k/v: (B, H, L, d); grid (B, H, q-blocks, kv-blocks); online softmax over
#   the KV axis.  Exact softmax probabilities are produced with ONE exp pass:
#   the loop stores p = exp(s - m_running) into the resident (tq, Lk) row
#   block, and finalize rescales each column block by exp(m_blk - m_fin) / l.
# ----------------------------------------------------------------------------
def _attn_kernel(q_ref, k_ref, v_ref, o_ref, attn_ref, m_scr, l_scr, acc_scr,
                 mblk_scr, *, inv_temp, tkv, n_kv_blocks, compute_dtype,
                 approx_recip):
    ki = pl.program_id(3)

    @pl.when(ki == 0)
    def _init():
        m_scr[...] = jnp.full_like(m_scr, -jnp.inf)
        l_scr[...] = jnp.zeros_like(l_scr)
        acc_scr[...] = jnp.zeros_like(acc_scr)

    q = (q_ref[...] * inv_temp).astype(compute_dtype)        # (tq, dk)
    k = k_ref[...].astype(compute_dtype)                     # (tkv, dk)
    v = v_ref[...].astype(compute_dtype)                     # (tkv, dv)

    s = jax.lax.dot_general(                                 # (tq, tkv), f32
        q, k, dimension_numbers=(((1,), (1,)), ((), ())),
        preferred_element_type=jnp.float32)

    m_prev = m_scr[...]                                      # (tq, 1)
    m_new = jnp.maximum(m_prev, jnp.max(s, axis=-1, keepdims=True))
    alpha = jnp.exp(m_prev - m_new)
    p = jnp.exp(s - m_new)                                   # the only exp over scores
    l_scr[...] = alpha * l_scr[...] + jnp.sum(p, axis=-1, keepdims=True)
    acc_scr[...] = alpha * acc_scr[...] + jax.lax.dot_general(
        p.astype(compute_dtype), v,
        dimension_numbers=(((1,), (0,)), ((), ())),
        preferred_element_type=jnp.float32)
    m_scr[...] = m_new

    if n_kv_blocks > 1:
        # Stash unnormalised probabilities + this block's reference max.
        col0 = pl.multiple_of(ki * tkv, tkv)
        attn_ref[:, pl.ds(col0, tkv)] = p.astype(attn_ref.dtype)
        mblk_scr[ki] = m_new

    @pl.when(ki == pl.num_programs(3) - 1)
    def _finalize():
        inv_l = pl.reciprocal(l_scr[...], approx=approx_recip)     # (tq, 1)
        o_ref[...] = (acc_scr[...] * inv_l).astype(o_ref.dtype)
        if n_kv_blocks == 1:
            attn_ref[...] = (p * inv_l).astype(attn_ref.dtype)
        else:
            m_fin = m_scr[...]
            for kb in range(n_kv_blocks):                           # static loop
                factor = jnp.exp(mblk_scr[kb] - m_fin) * inv_l      # (tq, 1)
                blk = attn_ref[:, kb * tkv:(kb + 1) * tkv].astype(jnp.float32)
                attn_ref[:, kb * tkv:(kb + 1) * tkv] = (
                    blk * factor).astype(attn_ref.dtype)


def scaled_dot_product_attention(qh, kh, vh, temperature, *,
                                 compute_dtype=jnp.bfloat16,
                                 attn_dtype=jnp.float32):
    """qh/kh/vh: (B, H, L, d) head-major.  Returns out (B, H, Lq, dv) and the
    exact softmax probabilities attn (B, H, Lq, Lk)."""
    B, H, Lq, dk = qh.shape
    Lk = kh.shape[2]
    dv = vh.shape[3]
    out_dtype = qh.dtype

    limit = _vmem_limit_bytes()
    budget = int(limit * 0.6)

    tkv = _choose_kv_tile(Lk, 512)
    n_kv = Lk // tkv
    kv_bufs = 3 if n_kv >= 4 else 2
    attn_isz = jnp.dtype(attn_dtype).itemsize

    def _footprint(tq):
        f = 2 * tq * _lane_pad(Lk) * attn_isz                       # resident attn row
        f += 2 * tq * _lane_pad(dk) * qh.dtype.itemsize             # q blocks
        f += kv_bufs * tkv * (_lane_pad(dk) + _lane_pad(dv)) * kh.dtype.itemsize
        f += 2 * tq * _lane_pad(dv) * jnp.dtype(out_dtype).itemsize  # o blocks
        f += tq * _lane_pad(dv) * 4                                 # acc scratch
        f += 2 * tq * 128 * 4                                       # m, l scratch
        f += n_kv * tq * 128 * 4                                    # per-block max
        return f

    tq = 256
    while tq > 8 and _footprint(tq) > budget:
        tq //= 2
    tq = min(tq, _round_up(Lq, 8))

    Lqp = _round_up(Lq, tq)
    if Lqp != Lq:
        # Zero-padded query rows give finite garbage that is sliced off below.
        qh = jnp.pad(qh, ((0, 0), (0, 0), (0, Lqp - Lq), (0, 0)))
    n_q = Lqp // tq

    kv_kwargs = {}
    if n_kv >= 4:
        kv_kwargs = dict(pipeline_mode=pl.Buffered(3))   # deepen K/V pipelining
    in_specs = [
        pl.BlockSpec((None, None, tq, dk), lambda b, h, qi, ki: (b, h, qi, 0)),
        pl.BlockSpec((None, None, tkv, dk), lambda b, h, qi, ki: (b, h, ki, 0),
                     **kv_kwargs),
        pl.BlockSpec((None, None, tkv, dv), lambda b, h, qi, ki: (b, h, ki, 0),
                     **kv_kwargs),
    ]
    out_specs = [
        pl.BlockSpec((None, None, tq, dv), lambda b, h, qi, ki: (b, h, qi, 0)),
        pl.BlockSpec((None, None, tq, Lk), lambda b, h, qi, ki: (b, h, qi, 0)),
    ]

    cost = pl.CostEstimate(
        flops=int(2 * B * H * Lq * Lk * (dk + dv)),
        transcendentals=int(B * H * Lq * Lk),
        bytes_accessed=int(
            qh.dtype.itemsize * B * H * (Lq * dk + n_q * Lk * (dk + dv))
            + jnp.dtype(out_dtype).itemsize * B * H * Lq * dv
            + attn_isz * B * H * Lq * Lk),
    )

    kernel = functools.partial(
        _attn_kernel,
        inv_temp=float(1.0 / temperature),
        tkv=tkv,
        n_kv_blocks=n_kv,
        compute_dtype=compute_dtype,
        approx_recip=(compute_dtype != jnp.float32),
    )
    out, attn = pl.pallas_call(
        kernel,
        out_shape=(
            jax.ShapeDtypeStruct((B, H, Lqp, dv), out_dtype),
            jax.ShapeDtypeStruct((B, H, Lqp, Lk), attn_dtype),
        ),
        grid_spec=pltpu.PrefetchScalarGridSpec(
            num_scalar_prefetch=0,
            grid=(B, H, n_q, n_kv),
            in_specs=in_specs,
            out_specs=out_specs,
            scratch_shapes=[
                pltpu.VMEM((tq, 1), jnp.float32),          # running max
                pltpu.VMEM((tq, 1), jnp.float32),          # running denom
                pltpu.VMEM((tq, dv), jnp.float32),         # output accumulator
                pltpu.VMEM((n_kv, tq, 1), jnp.float32),    # per-KV-block max
            ],
        ),
        compiler_params=pltpu.CompilerParams(
            dimension_semantics=("parallel", "parallel", "parallel", "arbitrary"),
            vmem_limit_bytes=limit,
        ),
        cost_estimate=cost,
    )(qh, kh, vh)
    if Lqp != Lq:
        out = out[:, :, :Lq, :]
        attn = attn[:, :, :Lq, :]
    return out, attn


# ----------------------------------------------------------------------------
# Kernel 3: output projection + residual + LayerNorm (eps=1e-6)
#   Fused while the full-D accumulator fits the VMEM budget; otherwise the
#   tiled linear runs first and a row-tiled residual+LN kernel follows.
# ----------------------------------------------------------------------------
def _fc_res_ln_kernel(x_ref, w_ref, res_ref, g_ref, b_ref, o_ref, acc_ref,
                      *, eps, compute_dtype):
    kk = pl.program_id(1)

    @pl.when(kk == 0)
    def _init():
        acc_ref[...] = jnp.zeros_like(acc_ref)

    acc_ref[...] += jax.lax.dot_general(
        x_ref[...].astype(compute_dtype),
        w_ref[...].astype(compute_dtype),
        dimension_numbers=(((1,), (1,)), ((), ())),
        preferred_element_type=jnp.float32,
    )

    @pl.when(kk == pl.num_programs(1) - 1)
    def _finalize():
        y = acc_ref[...] + res_ref[...].astype(jnp.float32)
        mean = jnp.mean(y, axis=-1, keepdims=True)
        var = jnp.mean(jnp.square(y - mean), axis=-1, keepdims=True)
        ynorm = (y - mean) * jax.lax.rsqrt(var + eps)
        o_ref[...] = (ynorm * g_ref[...] + b_ref[...]).astype(o_ref.dtype)


def _res_ln_kernel(y_ref, res_ref, g_ref, b_ref, o_ref, *, eps):
    y = y_ref[...].astype(jnp.float32) + res_ref[...].astype(jnp.float32)
    mean = jnp.mean(y, axis=-1, keepdims=True)
    var = jnp.mean(jnp.square(y - mean), axis=-1, keepdims=True)
    ynorm = (y - mean) * jax.lax.rsqrt(var + eps)
    o_ref[...] = (ynorm * g_ref[...] + b_ref[...]).astype(o_ref.dtype)


def _residual_layernorm(y2d, res2d, gamma, beta, *, eps):
    M, D = y2d.shape
    tm, Mp = _choose_tile(M, 512, 8)
    if Mp != M:
        y2d = jnp.pad(y2d, ((0, Mp - M), (0, 0)))
        res2d = jnp.pad(res2d, ((0, Mp - M), (0, 0)))
    cost = pl.CostEstimate(
        flops=int(10 * M * D), transcendentals=int(M),
        bytes_accessed=int((y2d.dtype.itemsize + 2 * res2d.dtype.itemsize) * M * D))
    out = pl.pallas_call(
        functools.partial(_res_ln_kernel, eps=eps),
        out_shape=jax.ShapeDtypeStruct((Mp, D), res2d.dtype),
        grid_spec=pltpu.PrefetchScalarGridSpec(
            num_scalar_prefetch=0,
            grid=(Mp // tm,),
            in_specs=[
                pl.BlockSpec((tm, D), lambda i: (i, 0)),
                pl.BlockSpec((tm, D), lambda i: (i, 0)),
                pl.BlockSpec((1, D), lambda i: (0, 0)),
                pl.BlockSpec((1, D), lambda i: (0, 0)),
            ],
            out_specs=pl.BlockSpec((tm, D), lambda i: (i, 0)),
        ),
        compiler_params=pltpu.CompilerParams(
            dimension_semantics=("parallel",),
            vmem_limit_bytes=_vmem_limit_bytes(),
        ),
        cost_estimate=cost,
    )(y2d, res2d, gamma.reshape(1, D), beta.reshape(1, D))
    return out[:M] if Mp != M else out


def fc_residual_layernorm(x2d, w_fc, res2d, gamma, beta, *, eps=1e-6,
                          compute_dtype=jnp.bfloat16):
    """o = LayerNorm(x2d @ w_fc.T + res2d)."""
    M, K = x2d.shape
    D = w_fc.shape[0]
    limit = _vmem_limit_bytes()

    tm, Mp = _choose_tile(M, 256, 8)
    tk, Kp = _choose_tile(K, 512, 128)
    Dl = _lane_pad(D)
    fused_fp = (5 * tm * Dl * 4                                   # acc + res + out
                + 2 * (tm + _round_up(D, 8)) * _lane_pad(tk) * 4  # x/w double-buffers
                + 4 * 8 * Dl * 4)                                 # gamma, beta
    if fused_fp > int(limit * 0.6):
        # Large d_model: keep the matmul fully tiled, do residual+LN separately.
        y2d = linear_nobias(x2d, w_fc, compute_dtype=compute_dtype,
                            out_dtype=jnp.float32)
        return _residual_layernorm(y2d, res2d, gamma, beta, eps=eps)

    if (Mp, Kp) != (M, K):
        x2d = jnp.pad(x2d, ((0, Mp - M), (0, Kp - K)))
    if Kp != K:
        w_fc = jnp.pad(w_fc, ((0, 0), (0, Kp - K)))
    if Mp != M:
        res2d = jnp.pad(res2d, ((0, Mp - M), (0, 0)))

    cost = pl.CostEstimate(
        flops=int(2 * M * K * D + 10 * M * D),
        transcendentals=int(M),
        bytes_accessed=int(x2d.dtype.itemsize * M * K + 4 * D * K
                           + res2d.dtype.itemsize * 2 * M * D),
    )
    out = pl.pallas_call(
        functools.partial(_fc_res_ln_kernel, eps=eps, compute_dtype=compute_dtype),
        out_shape=jax.ShapeDtypeStruct((Mp, D), res2d.dtype),
        grid_spec=pltpu.PrefetchScalarGridSpec(
            num_scalar_prefetch=0,
            grid=(Mp // tm, Kp // tk),
            in_specs=[
                pl.BlockSpec((tm, tk), lambda i, kk: (i, kk)),
                pl.BlockSpec((D, tk), lambda i, kk: (0, kk)),
                pl.BlockSpec((tm, D), lambda i, kk: (i, 0)),
                pl.BlockSpec((1, D), lambda i, kk: (0, 0)),
                pl.BlockSpec((1, D), lambda i, kk: (0, 0)),
            ],
            out_specs=pl.BlockSpec((tm, D), lambda i, kk: (i, 0)),
            scratch_shapes=[pltpu.VMEM((tm, D), jnp.float32)],
        ),
        compiler_params=pltpu.CompilerParams(
            dimension_semantics=("parallel", "arbitrary"),
            vmem_limit_bytes=limit,
        ),
        cost_estimate=cost,
    )(x2d, w_fc, res2d, gamma.reshape(1, D), beta.reshape(1, D))
    return out[:M] if Mp != M else out


# ----------------------------------------------------------------------------
# MultiHeadAttention forward (glue in plain JAX, hot paths in Pallas)
# ----------------------------------------------------------------------------
def multi_head_attention(q, k, v, params, n_head, d_k, d_v, *,
                         compute_dtype=jnp.bfloat16, attn_dtype=jnp.float32):
    B, Lq, D = q.shape
    Lk = k.shape[1]
    Lv = v.shape[1]
    residual = q
    # Projections emit `compute_dtype` activations (bf16 by default) so the
    # attention kernel's repeated K/V streaming moves half the HBM bytes.
    proj_dtype = compute_dtype

    if (q is k) and (k is v):
        # Self-attention fast path: one fused QKV projection.
        # TODO(synk): identity check misses semantically-equal distinct arrays,
        # which then take the 3-call projection path (perf only).
        w_qkv = jnp.concatenate(
            [params["w_qs"], params["w_ks"], params["w_vs"]], axis=0)
        qkv = linear_nobias(q.reshape(B * Lq, D), w_qkv,
                            compute_dtype=compute_dtype, out_dtype=proj_dtype)
        hk = n_head * d_k
        hv = n_head * d_v
        qp = qkv[:, :hk].reshape(B, Lq, n_head, d_k)
        kp = qkv[:, hk:2 * hk].reshape(B, Lk, n_head, d_k)
        vp = qkv[:, 2 * hk:2 * hk + hv].reshape(B, Lv, n_head, d_v)
    else:
        qp = linear_nobias(q.reshape(B * Lq, D), params["w_qs"],
                           compute_dtype=compute_dtype, out_dtype=proj_dtype
                           ).reshape(B, Lq, n_head, d_k)
        kp = linear_nobias(k.reshape(B * Lk, D), params["w_ks"],
                           compute_dtype=compute_dtype, out_dtype=proj_dtype
                           ).reshape(B, Lk, n_head, d_k)
        vp = linear_nobias(v.reshape(B * Lv, D), params["w_vs"],
                           compute_dtype=compute_dtype, out_dtype=proj_dtype
                           ).reshape(B, Lv, n_head, d_v)

    # (B, L, H, d) -> (B, H, L, d): the same head-major transpose the PyTorch
    # module performs; it makes every attention block a lane-dense (tile, d)
    # 2-D slab with the head dim as a 'parallel' grid axis.
    qh = qp.transpose(0, 2, 1, 3)
    kh = kp.transpose(0, 2, 1, 3)
    vh = vp.transpose(0, 2, 1, 3)

    out_h, attn = scaled_dot_product_attention(
        qh, kh, vh, temperature=d_k ** 0.5,
        compute_dtype=compute_dtype, attn_dtype=attn_dtype)

    out2d = out_h.transpose(0, 2, 1, 3).reshape(B * Lq, n_head * d_v)
    o = fc_residual_layernorm(
        out2d, params["w_fc"], residual.reshape(B * Lq, D),
        params["ln_gamma"], params["ln_beta"], eps=1e-6,
        compute_dtype=compute_dtype)
    # TODO(synk): the optional attention `mask` argument is not wired through
    # (forward exercised with mask=None); dropouts are identity (eval mode).
    return o.reshape(B, Lq, D), attn


# ----------------------------------------------------------------------------
# Pure-JAX reference for verification
# ----------------------------------------------------------------------------
def reference_mha(q, k, v, params, n_head, d_k, d_v):
    B, Lq, D = q.shape
    Lk, Lv = k.shape[1], v.shape[1]
    residual = q
    qp = (q @ params["w_qs"].T).reshape(B, Lq, n_head, d_k).transpose(0, 2, 1, 3)
    kp = (k @ params["w_ks"].T).reshape(B, Lk, n_head, d_k).transpose(0, 2, 1, 3)
    vp = (v @ params["w_vs"].T).reshape(B, Lv, n_head, d_v).transpose(0, 2, 1, 3)
    s = jnp.einsum("bhqd,bhkd->bhqk", qp / (d_k ** 0.5), kp)
    attn = jax.nn.softmax(s, axis=-1)
    out = jnp.einsum("bhqk,bhkd->bhqd", attn, vp)
    out = out.transpose(0, 2, 1, 3).reshape(B, Lq, n_head * d_v)
    y = out @ params["w_fc"].T + residual
    mean = y.mean(-1, keepdims=True)
    var = ((y - mean) ** 2).mean(-1, keepdims=True)
    y = (y - mean) / jnp.sqrt(var + 1e-6) * params["ln_gamma"] + params["ln_beta"]
    return y, attn


if __name__ == "__main__":
    B, L, d_model = 2, 8, 32
    n_head, d_k, d_v = 4, 8, 8

    key = jax.random.PRNGKey(0)
    keys = jax.random.split(key, 8)

    params = {
        "w_qs": jax.random.normal(keys[0], (n_head * d_k, d_model), jnp.float32) * 0.1,
        "w_ks": jax.random.normal(keys[1], (n_head * d_k, d_model), jnp.float32) * 0.1,
        "w_vs": jax.random.normal(keys[2], (n_head * d_v, d_model), jnp.float32) * 0.1,
        "w_fc": jax.random.normal(keys[3], (d_model, n_head * d_v), jnp.float32) * 0.1,
        "ln_gamma": jnp.ones((d_model,), jnp.float32),
        "ln_beta": jnp.zeros((d_model,), jnp.float32),
    }

    q = jax.random.normal(keys[4], (B, L, d_model), jnp.float32)
    k = jax.random.normal(keys[5], (B, L, d_model), jnp.float32)
    v = jax.random.normal(keys[6], (B, L, d_model), jnp.float32)

    # 1) Exact path: f32 MXU operands, cross-attention (3 projections).
    out, attn = multi_head_attention(q, k, v, params, n_head, d_k, d_v,
                                     compute_dtype=jnp.float32)
    out = jax.block_until_ready(out)
    attn = jax.block_until_ready(attn)
    ref_out, ref_attn = reference_mha(q, k, v, params, n_head, d_k, d_v)
    assert out.shape == (B, L, d_model)
    assert attn.shape == (B, n_head, L, L)
    assert jnp.allclose(out, ref_out, atol=1e-4, rtol=1e-4)
    assert jnp.allclose(attn, ref_attn, atol=1e-5, rtol=1e-4)

    # 2) Default path: bf16 MXU operands (f32 accumulation / f32 softmax),
    #    fused QKV projection (self-attention), approx reciprocal.
    out_b, attn_b = multi_head_attention(q, q, q, params, n_head, d_k, d_v)
    out_b = jax.block_until_ready(out_b)
    attn_b = jax.block_until_ready(attn_b)
    ref_out_b, ref_attn_b = reference_mha(q, q, q, params, n_head, d_k, d_v)
    assert out_b.shape == (B, L, d_model)
    assert jnp.allclose(out_b, ref_out_b, atol=1e-1, rtol=1e-1)
    assert jnp.allclose(attn_b, ref_attn_b, atol=2e-2, rtol=1e-1)

    print("KERNEL_OK")
</pallas_src>

<mosaic_0001>
module attributes {stable_mosaic.version = 11 : i64} {
  func.func @_linear_kernel(%arg0: i32, %arg1: i32, %arg2: i32, %arg3: memref<16x32xf32, #tpu.memory_space<vmem>>, %arg4: memref<32x32xf32, #tpu.memory_space<vmem>>, %arg5: memref<16x32xf32, #tpu.memory_space<vmem>>, %arg6: memref<16x32xf32, #tpu.memory_space<vmem>>) attributes {dimension_semantics = [#tpu.dimension_semantics<parallel>, #tpu.dimension_semantics<parallel>, #tpu.dimension_semantics<arbitrary>], iteration_bounds = array<i64: 1, 1, 1>, scalar_prefetch = 0 : i64, scratch_operands = 1 : i64, tpu.core_type = #tpu.core_type<tc>, window_params = [{transform_indices = @transform_0, window_bounds = array<i64: 16, 32>}, {transform_indices = @transform_1, window_bounds = array<i64: 32, 32>}, {transform_indices = @transform_2, window_bounds = array<i64: 16, 32>}]} {
    %c0_i32 = arith.constant 0 : i32
    %0 = arith.cmpi eq, %arg2, %c0_i32 : i32
    %1 = arith.extui %0 : i1 to i32
    %c0_i32_0 = arith.constant 0 : i32
    %2 = arith.cmpi ne, %1, %c0_i32_0 : i32
    scf.if %2 {
      %cst_10 = arith.constant 0.000000e+00 : f32
      %12 = vector.broadcast %cst_10 : f32 to vector<16x32xf32>
      %c0_11 = arith.constant 0 : index
      %c0_12 = arith.constant 0 : index
      %13 = vector.load %arg6[%c0_11, %c0_12] : memref<16x32xf32, #tpu.memory_space<vmem>>, vector<16x32xf32>
      tpu.vector_store %arg6[%c0_11, %c0_12], %12 {strides = array<i32>} : memref<16x32xf32, #tpu.memory_space<vmem>>, vector<16x32xf32>,
    } else {
    }
    %c0 = arith.constant 0 : index
    %c0_1 = arith.constant 0 : index
    %3 = vector.load %arg6[%c0, %c0_1] : memref<16x32xf32, #tpu.memory_space<vmem>>, vector<16x32xf32>
    %c0_2 = arith.constant 0 : index
    %c0_3 = arith.constant 0 : index
    %4 = vector.load %arg3[%c0_2, %c0_3] : memref<16x32xf32, #tpu.memory_space<vmem>>, vector<16x32xf32>
    %c0_4 = arith.constant 0 : index
    %c0_5 = arith.constant 0 : index
    %5 = vector.load %arg4[%c0_4, %c0_5] : memref<32x32xf32, #tpu.memory_space<vmem>>, vector<32x32xf32>
    %cst = arith.constant dense<0.000000e+00> : vector<16x32xf32>
    %6 = tpu.matmul %4, %5, %cst {dimension_numbers = #tpu.dot_dimension_numbers<[1], [1], [0], [0], [0, 0, 1, 0], [], []>} : vector<16x32xf32>, vector<32x32xf32>, vector<16x32xf32> -> vector<16x32xf32>
    %7 = arith.addf %3, %6 : vector<16x32xf32>
    %c0_6 = arith.constant 0 : index
    %c0_7 = arith.constant 0 : index
    %8 = vector.load %arg6[%c0_6, %c0_7] : memref<16x32xf32, #tpu.memory_space<vmem>>, vector<16x32xf32>
    tpu.vector_store %arg6[%c0_6, %c0_7], %7 {strides = array<i32>} : memref<16x32xf32, #tpu.memory_space<vmem>>, vector<16x32xf32>,
    %c0_i32_8 = arith.constant 0 : i32
    %9 = arith.cmpi eq, %arg2, %c0_i32_8 : i32
    %10 = arith.extui %9 : i1 to i32
    %c0_i32_9 = arith.constant 0 : i32
    %11 = arith.cmpi ne, %10, %c0_i32_9 : i32
    scf.if %11 {
      %c0_10 = arith.constant 0 : index
      %c0_11 = arith.constant 0 : index
      %12 = vector.load %arg6[%c0_10, %c0_11] : memref<16x32xf32, #tpu.memory_space<vmem>>, vector<16x32xf32>
      %c0_12 = arith.constant 0 : index
      %c0_13 = arith.constant 0 : index
      %13 = vector.load %arg5[%c0_12, %c0_13] : memref<16x32xf32, #tpu.memory_space<vmem>>, vector<16x32xf32>
      tpu.vector_store %arg5[%c0_12, %c0_13], %12 {strides = array<i32>} : memref<16x32xf32, #tpu.memory_space<vmem>>, vector<16x32xf32>,
    } else {
    }
    return
  }
  func.func @transform_0(%arg0: i32, %arg1: i32, %arg2: i32) -> (i32, i32) {
    %c0_i32 = arith.constant 0 : i32
    return %arg0, %arg2 : i32, i32
  }
  func.func @transform_1(%arg0: i32, %arg1: i32, %arg2: i32) -> (i32, i32) {
    %c0_i32 = arith.constant 0 : i32
    return %arg1, %arg2 : i32, i32
  }
  func.func @transform_2(%arg0: i32, %arg1: i32, %arg2: i32) -> (i32, i32) {
    %c0_i32 = arith.constant 0 : i32
    return %arg0, %arg1 : i32, i32
  }
}

</mosaic_0001>

<llo_original>
// kernel: tpu_custom_call.1
$region0: #{tpu_custom_call.1}
  #allocation0 [shape = 'u32[]', space=smem, size = 0x4, offset = 0x4, fixed_abs, tag = 'smem constant byte address 0x4 - core index']
  #allocation1 [shape = 'u32[144,128]{1,0:T(1,128)}', space=vmem, size = 0x12000, scoped, tag = 'internal scratch']
  #allocation2 [shape = 'f32[16,32]{1,0:T(8,128)}', space=vmem, size = 0x2000, scoped, tag = 'scratch operand']
  %s0 = inlined_call_operand.hbm [shape: f32[16,32], index: 0, kind: input, shape index: {}]
  %s1 = inlined_call_operand.hbm [shape: f32[32,32], index: 1, kind: input, shape index: {}]
  %s2 = inlined_call_operand.hbm [shape: f32[16,32], index: 2, kind: output, shape index: {}]
  %s3 = sld [smem:[#allocation0]]
  $region34: #{tpu_custom_call.1} parent=0
    _
  %s5 = ssub.s32 1, %s3
  %s6 = scalar_select 0, %s5, %s3
  $region1: #{tpu_custom_call.1} parent=0
    #allocation3 [shape = 'u8[8192]{0}', space=vmem, size = 0x2000, scoped, tag = 'input window, operand 0, single buffered']
    #allocation4 [shape = 's32[1]{0}', space=sflag, size = 0x4, scoped, tag = 'scoped memory for tpu_custom_call.1']
    #allocation5 [shape = 's32[1]{0}', space=sflag, size = 0x4, scoped, tag = 'scoped memory for tpu_custom_call.1']
    #allocation6 [shape = 'u8[16384]{0}', space=vmem, size = 0x4000, scoped, tag = 'input window, operand 1, single buffered']
    #allocation7 [shape = 's32[1]{0}', space=sflag, size = 0x4, scoped, tag = 'scoped memory for tpu_custom_call.1']
    #allocation8 [shape = 'u8[8192]{0}', space=vmem, size = 0x2000, scoped, tag = 'output window, operand 0, single buffered']
    %7 = vsyncpa [#allocation4], 0
    %8 = vsyncpa [#allocation7], 0
    %9 = vsyncpa [#allocation5], 0
    // Predicated region
    $region2: #{tpu_custom_call.1} parent=1 // pred_check
      _
    $region3: #{tpu_custom_call.1} parent=1 // pred_check_branch
      %11 = sbr.rel (0) target = $region5
    $region4: #{tpu_custom_call.1} parent=1 // pred_region
      %s13 = ssub.s32 256, 256
      %14 = vsyncadd [#allocation4], %s13
      %s15 = sshll.u32 [#allocation3], 4
      %s16 = int_to_ptr.vmem [resolvable:$true] %s15
      %21 = dma.hbm_to_vmem [thread:$0]  %s0, 256, %s16, [#allocation4], 128, 128, 8
    $region5: #{tpu_custom_call.1} parent=1 // pred_fallthru
      _
    // Predicated region
    $region6: #{tpu_custom_call.1} parent=1 // pred_check
      _
    $region7: #{tpu_custom_call.1} parent=1 // pred_check_branch
      %23 = sbr.rel (0) target = $region9
    $region8: #{tpu_custom_call.1} parent=1 // pred_region
      %s25 = ssub.s32 512, 512
      %26 = vsyncadd [#allocation7], %s25
      %s27 = sshll.u32 [#allocation6], 4
      %s28 = int_to_ptr.vmem [resolvable:$true] %s27
      %33 = dma.hbm_to_vmem [thread:$0]  %s1, 512, %s28, [#allocation7], 128, 128, 8
    $region9: #{tpu_custom_call.1} parent=1 // pred_fallthru
      _
    // Predicated region
    $region10: #{tpu_custom_call.1} parent=1 // pred_check
      _
    $region11: #{tpu_custom_call.1} parent=1 // pred_check_branch
      %35 = sbr.rel (0) target = $region13
    $region12: #{tpu_custom_call.1} parent=1 // pred_region
      %36 = dma.done [#allocation4], 256
    $region13: #{tpu_custom_call.1} parent=1 // pred_fallthru
      _
    // Predicated region
    $region14: #{tpu_custom_call.1} parent=1 // pred_check
      _
    $region15: #{tpu_custom_call.1} parent=1 // pred_check_branch
      %38 = sbr.rel (0) target = $region17
    $region16: #{tpu_custom_call.1} parent=1 // pred_region
      %39 = dma.done [#allocation7], 512
    $region17: #{tpu_custom_call.1} parent=1 // pred_fallthru
      _
    %p40 = scmp.eq.s32.totalorder 0, 0
    // Predicated region
    $region18: #{tpu_custom_call.1} parent=1 // pred_check
      %p41 = pneg %p40
    $region19: #{tpu_custom_call.1} parent=1 // pred_check_branch
      %43 = sbr.rel (%p41) target = $region21
    $region20: #{tpu_custom_call.1} parent=1 // pred_region
      %vm44 = vcmask 261120
      %45 = vst.msk [vmem:[#allocation2] sm:$0xff] %vm44, 0.0
      %46 = vst.msk [vmem:[#allocation2 + $0x8] sm:$0xff] %vm44, 0.0
    $region21: #{tpu_custom_call.1} parent=1 // pred_fallthru
      _
    %v47 = vld [vmem:[#allocation2] sm:$0xff]
    %v48 = vld [vmem:[#allocation2 + $0x8] sm:$0xff]
    %v49 = vld [vmem:[#allocation3] sm:$0xff]
    %v50 = vld [vmem:[#allocation3 + $0x8] sm:$0xff]
    %v51 = vld [vmem:[#allocation6] sm:$0xff]
    %v52 = vld [vmem:[#allocation6 + $0x8] sm:$0xff]
    %v53 = vld [vmem:[#allocation6 + $0x10] sm:$0xff]
    %v54 = vld [vmem:[#allocation6 + $0x18] sm:$0xff]
    %vm55 = vcmask 261120
    %v57 = vsel %vm55, %v49, 0
    %v60 = vsel %vm55, %v50, 0
    %v63 = vsel %vm55, %v51, 0
    %v66 = vsel %vm55, %v52, 0
    %v69 = vsel %vm55, %v53, 0
    %v72 = vsel %vm55, %v54, 0
    %74 = vmatprep.subr.mxu0 0.0
    %75 = vmatpush1.xpose.msra.mxu0 %v63
    %76 = vmatprep.subr.mxu0 0.0
    %77 = vmatpush1.xpose.msra.mxu0 %v66
    %78 = vmatprep.subr.mxu0 0.0
    %79 = vmatpush1.xpose.msra.mxu0 %v69
    %80 = vmatprep.subr.mxu0 0.0
    %81 = vmatpush1.xpose.msra.mxu0 %v72
    %82 = vmatprep.subr.mxu0 0.0
    %83 = vmatpush1.xpose.msra.mxu0 0.0
    %84 = vmatprep.subr.mxu0 0.0
    %85 = vmatpush1.xpose.msra.mxu0 0.0
    %86 = vmatprep.subr.mxu0 0.0
    %87 = vmatpush1.xpose.msra.mxu0 0.0
    %88 = vmatprep.subr.mxu0 0.0
    %89 = vmatpush1.xpose.msra.mxu0 0.0
    %90 = vmatprep.subr.mxu0 0.0
    %91 = vmatpush1.xpose.msra.mxu0 0.0
    %92 = vmatprep.subr.mxu0 0.0
    %93 = vmatpush1.xpose.msra.mxu0 0.0
    %94 = vmatprep.subr.mxu0 0.0
    %95 = vmatpush1.xpose.msra.mxu0 0.0
    %96 = vmatprep.subr.mxu0 0.0
    %97 = vmatpush1.xpose.msra.mxu0 0.0
    %98 = vmatprep.subr.mxu0 0.0
    %99 = vmatpush1.xpose.msra.mxu0 0.0
    %100 = vmatprep.subr.mxu0 0.0
    %101 = vmatpush1.xpose.msra.mxu0 0.0
    %102 = vmatprep.subr.mxu0 0.0
    %103 = vmatpush1.xpose.msra.mxu0 0.0
    %104 = vmatprep.subr.mxu0 0.0
    %105 = vmatpush1.xpose.msra.mxu0 0.0
    %106 = vmatprep.subr.mxu0 0.0
    %107 = vmatpush1.xpose.msra.mxu0 0.0
    %108 = vmatprep.subr.mxu0 0.0
    %109 = vmatpush1.xpose.msra.mxu0 0.0
    %110 = vmatprep.subr.mxu0 0.0
    %111 = vmatpush1.xpose.msra.mxu0 0.0
    %112 = vmatprep.subr.mxu0 0.0
    %113 = vmatpush1.xpose.msra.mxu0 0.0
    %114 = vmatprep.subr.mxu0 0.0
    %115 = vmatpush1.xpose.msra.mxu0 0.0
    %116 = vmatprep.subr.mxu0 0.0
    %117 = vmatpush1.xpose.msra.mxu0 0.0
    %118 = vmatprep.subr.mxu0 0.0
    %119 = vmatpush1.xpose.msra.mxu0 0.0
    %120 = vmatprep.subr.mxu0 0.0
    %121 = vmatpush1.xpose.msra.mxu0 0.0
    %122 = vmatprep.subr.mxu0 0.0
    %123 = vmatpush1.xpose.msra.mxu0 0.0
    %124 = vmatprep.subr.mxu0 0.0
    %125 = vmatpush1.xpose.msra.mxu0 0.0
    %126 = vmatprep.subr.mxu0 0.0
    %127 = vmatpush1.xpose.msra.mxu0 0.0
    %128 = vmatprep.subr.mxu0 0.0
    %129 = vmatpush1.xpose.msra.mxu0 0.0
    %130 = vmatprep.subr.mxu0 0.0
    %131 = vmatpush1.xpose.msra.mxu0 0.0
    %132 = vmatprep.subr.mxu0 0.0
    %133 = vmatpush1.xpose.msra.mxu0 0.0
    %134 = vmatprep.subr.mxu0 0.0
    %135 = vmatpush1.xpose.msra.mxu0 0.0
    %136 = vmatprep.subr.mxu0 0.0
    %137 = vmatpush1.xpose.msra.mxu0 0.0
    %138 = vmatprep.mubr.f32.mxu0 0.0
    %139 = vmatmul.mubr.f32.gmra.mrb[0].mxu0 %v57
    %v140 = vpop.f32.mrb[0].mxu0
    %v141 = vadd.f32 0.0, %v140
    %v142 = vpop.f32.mrb[0].mxu0
    %143 = vmatprep.mubr.f32.mxu0 0.0
    %144 = vmatmul.mubr.f32.gmra.mrb[0].mxu0 %v60
    %v145 = vpop.f32.mrb[0].mxu0
    %v146 = vadd.f32 0.0, %v145
    %v147 = vpop.f32.mrb[0].mxu0
    %148 = vdwg.mxu0
    %v149 = vadd.f32 %v47, %v141
    %v150 = vadd.f32 %v48, %v146
    %151 = vst.msk [vmem:[#allocation2] sm:$0xff] %vm55, %v149
    %152 = vst.msk [vmem:[#allocation2 + $0x8] sm:$0xff] %vm55, %v150
    // Predicated region
    $region22: #{tpu_custom_call.1} parent=1 // pred_check
      %p153 = pneg %p40
    $region23: #{tpu_custom_call.1} parent=1 // pred_check_branch
      %155 = sbr.rel (%p153) target = $region25
    $region24: #{tpu_custom_call.1} parent=1 // pred_region
      %v156 = vld [vmem:[#allocation2] sm:$0xff]
      %v157 = vld [vmem:[#allocation2 + $0x8] sm:$0xff]
      %158 = vst.msk [vmem:[#allocation8] sm:$0xff] %vm55, %v156
      %159 = vst.msk [vmem:[#allocation8 + $0x8] sm:$0xff] %vm55, %v157
    $region25: #{tpu_custom_call.1} parent=1 // pred_fallthru
      _
    // Predicated region
    $region26: #{tpu_custom_call.1} parent=1 // pred_check
      _
    $region27: #{tpu_custom_call.1} parent=1 // pred_check_branch
      %161 = sbr.rel (0) target = $region29
    $region28: #{tpu_custom_call.1} parent=1 // pred_region
      %s163 = ssub.s32 256, 256
      %164 = vsyncadd [#allocation5], %s163
      %s165 = sshll.u32 [#allocation8], 4
      %s166 = int_to_ptr.vmem [resolvable:$true] %s165
      %171 = dma.vmem_to_hbm [thread:$0]  %s166, 256, %s2, [#allocation5], 128, 128, 8
    $region29: #{tpu_custom_call.1} parent=1 // pred_fallthru
      _
    // Predicated region
    $region30: #{tpu_custom_call.1} parent=1 // pred_check
      _
    $region31: #{tpu_custom_call.1} parent=1 // pred_check_branch
      %173 = sbr.rel (0) target = $region33
    $region32: #{tpu_custom_call.1} parent=1 // pred_region
      %174 = dma.done [#allocation5], 256
    $region33: #{tpu_custom_call.1} parent=1 // pred_fallthru
      _
    %175 = vsyncpa [#allocation4], 1
    %176 = vsyncpa [#allocation7], 1
    %177 = vsyncpa [#allocation5], 1

</llo_original>
